<compile_context>
chip_gen: v5e
topology: v5e:2x2
jax: 0.10.0
libtpu: 0.0.40
codegen_flags: <defaults>
</compile_context>

<pallas_src>
import jax
import jax.numpy as jnp
from jax.experimental import pallas as pl
from jax.experimental.pallas import tpu as pltpu

NUM_POLICY = 9          # board cells -> policy logits
HEAD_WIDTH = 16         # fused head rows: 9 policy + 1 value + 6 zero pad
LANE = 128              # TPU lane width


def _round_up(n, m):
    return ((n + m - 1) // m) * m


def tictactoe_kernel(x_ref, w1_ref, b1_ref, w2_ref, b2_ref, wh_ref, bh_ref,
                     out_ref):
    x = x_ref[...]                                                 # (9, TB)

    # fc1 + relu : (64, 9) @ (9, TB) -> (64, TB)
    h1 = jnp.dot(w1_ref[...], x, preferred_element_type=jnp.float32) + b1_ref[...]
    h1 = jnp.maximum(h1, 0.0)

    # fc2 + relu : (64, 64) @ (64, TB) -> (64, TB)
    h2 = jnp.dot(w2_ref[...], h1, preferred_element_type=jnp.float32) + b2_ref[...]
    h2 = jnp.maximum(h2, 0.0)

    # fused policy|value head : (16, 64) @ (64, TB) -> (16, TB)
    logits = jnp.dot(wh_ref[...], h2, preferred_element_type=jnp.float32) + bh_ref[...]

    row = jax.lax.broadcasted_iota(jnp.int32, logits.shape, 0)     # (16, TB)
    pmask = row < NUM_POLICY

    # log_softmax over the 9 policy rows only (mask out value/pad rows).
    masked = jnp.where(pmask, logits, -jnp.inf)
    m = jnp.max(masked, axis=0, keepdims=True)                     # (1, TB)
    shifted = logits - m
    sumexp = jnp.sum(jnp.where(pmask, jnp.exp(shifted), 0.0),
                     axis=0, keepdims=True)
    log_policy = shifted - jnp.log(sumexp)

    value = jnp.tanh(logits)                                       # valid at row 9

    # [log_policy ; tanh(value) ; zeros] in one lane-dense store.
    out_ref[...] = jnp.where(pmask, log_policy,
                             jnp.where(row == NUM_POLICY, value, 0.0))


def _choose_tile(batch, block_b):
    """Lane-aligned batch tile derived from a target grid-step count."""
    b_lanes = _round_up(batch, LANE)
    # Enough tiles to keep each tile <= block_b lanes; at least 2 tiles when
    # there is work for 2 (v7x megacore), never more tiles than lane-groups.
    num_tiles = pl.cdiv(b_lanes, block_b)
    num_tiles = max(num_tiles, min(2, b_lanes // LANE))
    tb = _round_up(pl.cdiv(b_lanes, num_tiles), LANE)
    num_tiles = pl.cdiv(b_lanes, tb)
    return tb, tb * num_tiles


def tictactoe_forward(x, params, *, block_b=8192):
    """x: (B, 9) f32.  params in PyTorch nn.Linear layout (w: (out, in), b: (out,))."""
    w1, b1, w2, b2, wp, bp, wv, bv = params
    B, F = x.shape
    H = w1.shape[0]

    # Fuse the two heads into one sublane-padded weight / bias: (16, 64), (16, 1).
    pad = HEAD_WIDTH - (wp.shape[0] + wv.shape[0])
    wh = jnp.concatenate([wp, wv, jnp.zeros((pad, H), jnp.float32)], axis=0)
    bh = jnp.concatenate([bp, bv, jnp.zeros((pad,), jnp.float32)], axis=0)

    # Column-vector biases broadcast over the lane (batch) axis in-kernel.
    b1c = b1.reshape(H, 1)
    b2c = b2.reshape(H, 1)
    bhc = bh.reshape(HEAD_WIDTH, 1)

    # Batch on lanes: (9, B), padded to a whole number of lane-aligned tiles.
    tb, b_padded = _choose_tile(B, block_b)
    xT = x.T
    if b_padded != B:
        xT = jnp.pad(xT, ((0, 0), (0, b_padded - B)))
    grid = (b_padded // tb,)

    def resident(shape):
        # Whole-array block, constant block index -> stays resident in VMEM.
        return pl.BlockSpec(shape, lambda i: (0, 0))

    out = pl.pallas_call(
        tictactoe_kernel,
        out_shape=jax.ShapeDtypeStruct((HEAD_WIDTH, b_padded), jnp.float32),
        grid=grid,
        in_specs=[
            pl.BlockSpec((F, tb), lambda i: (0, i)),      # x: tiled over batch lanes
            resident(w1.shape), resident(b1c.shape),
            resident(w2.shape), resident(b2c.shape),
            resident(wh.shape), resident(bhc.shape),
        ],
        out_specs=pl.BlockSpec((HEAD_WIDTH, tb), lambda i: (0, i)),
        compiler_params=pltpu.CompilerParams(
            dimension_semantics=("parallel",),            # shard batch across v7x TCs
        ),
    )(xT, w1, b1c, w2, b2c, wh, bhc)

    policy = out[:NUM_POLICY, :B].T                       # (B, 9) log-probs
    value = out[NUM_POLICY:NUM_POLICY + 1, :B].T          # (B, 1) tanh value
    return policy, value


def init_params(key):
    """Deterministic init matching nn.Linear shapes (w: (out, in), b: (out,))."""
    def linear(key, fan_in, fan_out):
        kw, kb = jax.random.split(key)
        bound = 1.0 / jnp.sqrt(float(fan_in))
        w = jax.random.uniform(kw, (fan_out, fan_in), jnp.float32, -bound, bound)
        b = jax.random.uniform(kb, (fan_out,), jnp.float32, -bound, bound)
        return w, b

    k1, k2, k3, k4 = jax.random.split(key, 4)
    w1, b1 = linear(k1, 9, 64)    # fc1
    w2, b2 = linear(k2, 64, 64)   # fc2
    wp, bp = linear(k3, 64, 9)    # policy_head
    wv, bv = linear(k4, 64, 1)    # value_head
    return (w1, b1, w2, b2, wp, bp, wv, bv)


def reference_forward(x, params):
    w1, b1, w2, b2, wp, bp, wv, bv = params
    h1 = jnp.maximum(x @ w1.T + b1, 0.0)
    h2 = jnp.maximum(h1 @ w2.T + b2, 0.0)
    policy = jax.nn.log_softmax(h2 @ wp.T + bp, axis=1)
    value = jnp.tanh(h2 @ wv.T + bv)
    return policy, value


if __name__ == "__main__":
    batch = 8
    key_x, key_p = jax.random.split(jax.random.PRNGKey(0))
    # Board encoding: values in {-1, 0, 1} like a tic-tac-toe state, flattened to 9.
    x = jax.random.randint(key_x, (batch, 9), minval=-1, maxval=2).astype(jnp.float32)

    params = init_params(key_p)

    policy, value = tictactoe_forward(x, params)
    jax.block_until_ready((policy, value))

    ref_policy, ref_value = reference_forward(x, params)
    assert policy.shape == (batch, 9) and value.shape == (batch, 1)
    assert jnp.allclose(policy, ref_policy, atol=1e-5, rtol=1e-5)
    assert jnp.allclose(value, ref_value, atol=1e-5, rtol=1e-5)

    print("KERNEL_OK")
</pallas_src>

<mosaic_0001>
module attributes {stable_mosaic.version = 11 : i64} {
  func.func @tictactoe_kernel(%arg0: i32, %arg1: memref<9x128xf32, #tpu.memory_space<vmem>>, %arg2: memref<64x9xf32, #tpu.memory_space<vmem>>, %arg3: memref<64x1xf32, #tpu.memory_space<vmem>>, %arg4: memref<64x64xf32, #tpu.memory_space<vmem>>, %arg5: memref<64x1xf32, #tpu.memory_space<vmem>>, %arg6: memref<16x64xf32, #tpu.memory_space<vmem>>, %arg7: memref<16x1xf32, #tpu.memory_space<vmem>>, %arg8: memref<16x128xf32, #tpu.memory_space<vmem>>) attributes {dimension_semantics = [#tpu.dimension_semantics<parallel>], iteration_bounds = array<i64: 1>, scalar_prefetch = 0 : i64, scratch_operands = 0 : i64, tpu.core_type = #tpu.core_type<tc>, window_params = [{transform_indices = @transform_0, window_bounds = array<i64: 9, 128>}, {pipeline_mode = #tpu.pipeline_mode<synchronous>, transform_indices = @transform_1, window_bounds = array<i64: 64, 9>}, {pipeline_mode = #tpu.pipeline_mode<synchronous>, transform_indices = @transform_2, window_bounds = array<i64: 64, 1>}, {pipeline_mode = #tpu.pipeline_mode<synchronous>, transform_indices = @transform_3, window_bounds = array<i64: 64, 64>}, {pipeline_mode = #tpu.pipeline_mode<synchronous>, transform_indices = @transform_4, window_bounds = array<i64: 64, 1>}, {pipeline_mode = #tpu.pipeline_mode<synchronous>, transform_indices = @transform_5, window_bounds = array<i64: 16, 64>}, {pipeline_mode = #tpu.pipeline_mode<synchronous>, transform_indices = @transform_6, window_bounds = array<i64: 16, 1>}, {transform_indices = @transform_7, window_bounds = array<i64: 16, 128>}]} {
    %c0 = arith.constant 0 : index
    %c0_0 = arith.constant 0 : index
    %0 = vector.load %arg1[%c0, %c0_0] : memref<9x128xf32, #tpu.memory_space<vmem>>, vector<9x128xf32>
    %c0_1 = arith.constant 0 : index
    %c0_2 = arith.constant 0 : index
    %1 = vector.load %arg2[%c0_1, %c0_2] : memref<64x9xf32, #tpu.memory_space<vmem>>, vector<64x9xf32>
    %cst = arith.constant dense<0.000000e+00> : vector<64x128xf32>
    %2 = tpu.matmul %1, %0, %cst {dimension_numbers = #tpu.dot_dimension_numbers<[1], [0], [0], [1], [0, 0, 1, 1], [], []>} : vector<64x9xf32>, vector<9x128xf32>, vector<64x128xf32> -> vector<64x128xf32>
    %c0_3 = arith.constant 0 : index
    %c0_4 = arith.constant 0 : index
    %3 = vector.load %arg3[%c0_3, %c0_4] : memref<64x1xf32, #tpu.memory_space<vmem>>, vector<64x1xf32>
    %4 = vector.broadcast %3 : vector<64x1xf32> to vector<64x128xf32>
    %5 = arith.addf %2, %4 : vector<64x128xf32>
    %cst_5 = arith.constant 0.000000e+00 : f32
    %6 = vector.broadcast %cst_5 : f32 to vector<64x128xf32>
    %7 = arith.maximumf %5, %6 : vector<64x128xf32>
    %c0_6 = arith.constant 0 : index
    %c0_7 = arith.constant 0 : index
    %8 = vector.load %arg4[%c0_6, %c0_7] : memref<64x64xf32, #tpu.memory_space<vmem>>, vector<64x64xf32>
    %cst_8 = arith.constant dense<0.000000e+00> : vector<64x128xf32>
    %9 = tpu.matmul %8, %7, %cst_8 {dimension_numbers = #tpu.dot_dimension_numbers<[1], [0], [0], [1], [0, 0, 1, 1], [], []>} : vector<64x64xf32>, vector<64x128xf32>, vector<64x128xf32> -> vector<64x128xf32>
    %c0_9 = arith.constant 0 : index
    %c0_10 = arith.constant 0 : index
    %10 = vector.load %arg5[%c0_9, %c0_10] : memref<64x1xf32, #tpu.memory_space<vmem>>, vector<64x1xf32>
    %11 = vector.broadcast %10 : vector<64x1xf32> to vector<64x128xf32>
    %12 = arith.addf %9, %11 : vector<64x128xf32>
    %cst_11 = arith.constant 0.000000e+00 : f32
    %13 = vector.broadcast %cst_11 : f32 to vector<64x128xf32>
    %14 = arith.maximumf %12, %13 : vector<64x128xf32>
    %c0_12 = arith.constant 0 : index
    %c0_13 = arith.constant 0 : index
    %15 = vector.load %arg6[%c0_12, %c0_13] : memref<16x64xf32, #tpu.memory_space<vmem>>, vector<16x64xf32>
    %cst_14 = arith.constant dense<0.000000e+00> : vector<16x128xf32>
    %16 = tpu.matmul %15, %14, %cst_14 {dimension_numbers = #tpu.dot_dimension_numbers<[1], [0], [0], [1], [0, 0, 1, 1], [], []>} : vector<16x64xf32>, vector<64x128xf32>, vector<16x128xf32> -> vector<16x128xf32>
    %c0_15 = arith.constant 0 : index
    %c0_16 = arith.constant 0 : index
    %17 = vector.load %arg7[%c0_15, %c0_16] : memref<16x1xf32, #tpu.memory_space<vmem>>, vector<16x1xf32>
    %18 = vector.broadcast %17 : vector<16x1xf32> to vector<16x128xf32>
    %19 = arith.addf %16, %18 : vector<16x128xf32>
    %20 = tpu.iota {dimensions = array<i32: 0>} : vector<16x128xi32>
    %c9_i32 = arith.constant 9 : i32
    %21 = vector.broadcast %c9_i32 : i32 to vector<16x128xi32>
    %22 = arith.cmpi slt, %20, %21 : vector<16x128xi32>
    %cst_17 = arith.constant 0xFF800000 : f32
    %23 = vector.broadcast %cst_17 : f32 to vector<16x128xf32>
    %24 = arith.select %22, %19, %23 : vector<16x128xi1>, vector<16x128xf32>
    %cst_18 = arith.constant dense<0xFF800000> : vector<128xf32>
    %25 = vector.multi_reduction <maximumf>, %24, %cst_18 [0] : vector<16x128xf32> to vector<128xf32>
    %26 = vector.shape_cast %25 : vector<128xf32> to vector<1x128xf32>
    %27 = vector.broadcast %26 : vector<1x128xf32> to vector<16x128xf32>
    %28 = arith.subf %19, %27 : vector<16x128xf32>
    %29 = math.exp %28 : vector<16x128xf32>
    %cst_19 = arith.constant 0.000000e+00 : f32
    %30 = vector.broadcast %cst_19 : f32 to vector<16x128xf32>
    %31 = arith.select %22, %29, %30 : vector<16x128xi1>, vector<16x128xf32>
    %cst_20 = arith.constant dense<0.000000e+00> : vector<128xf32>
    %32 = vector.multi_reduction <add>, %31, %cst_20 [0] : vector<16x128xf32> to vector<128xf32>
    %33 = vector.shape_cast %32 : vector<128xf32> to vector<1x128xf32>
    %34 = math.log %33 : vector<1x128xf32>
    %35 = vector.broadcast %34 : vector<1x128xf32> to vector<16x128xf32>
    %36 = arith.subf %28, %35 : vector<16x128xf32>
    %37 = math.tanh %19 : vector<16x128xf32>
    %c9_i32_21 = arith.constant 9 : i32
    %38 = vector.broadcast %c9_i32_21 : i32 to vector<16x128xi32>
    %39 = arith.cmpi eq, %20, %38 : vector<16x128xi32>
    %cst_22 = arith.constant 0.000000e+00 : f32
    %40 = vector.broadcast %cst_22 : f32 to vector<16x128xf32>
    %41 = arith.select %39, %37, %40 : vector<16x128xi1>, vector<16x128xf32>
    %42 = arith.select %22, %36, %41 : vector<16x128xi1>, vector<16x128xf32>
    %c0_23 = arith.constant 0 : index
    %c0_24 = arith.constant 0 : index
    %43 = vector.load %arg8[%c0_23, %c0_24] : memref<16x128xf32, #tpu.memory_space<vmem>>, vector<16x128xf32>
    tpu.vector_store %arg8[%c0_23, %c0_24], %42 {strides = array<i32>} : memref<16x128xf32, #tpu.memory_space<vmem>>, vector<16x128xf32>,
    return
  }
  func.func @transform_0(%arg0: i32) -> (i32, i32) {
    %c0_i32 = arith.constant 0 : i32
    %c0_i32_0 = arith.constant 0 : i32
    return %c0_i32, %arg0 : i32, i32
  }
  func.func @transform_1(%arg0: i32) -> (i32, i32) {
    %c0_i32 = arith.constant 0 : i32
    %c0_i32_0 = arith.constant 0 : i32
    %c0_i32_1 = arith.constant 0 : i32
    return %c0_i32, %c0_i32_0 : i32, i32
  }
  func.func @transform_2(%arg0: i32) -> (i32, i32) {
    %c0_i32 = arith.constant 0 : i32
    %c0_i32_0 = arith.constant 0 : i32
    %c0_i32_1 = arith.constant 0 : i32
    return %c0_i32, %c0_i32_0 : i32, i32
  }
  func.func @transform_3(%arg0: i32) -> (i32, i32) {
    %c0_i32 = arith.constant 0 : i32
    %c0_i32_0 = arith.constant 0 : i32
    %c0_i32_1 = arith.constant 0 : i32
    return %c0_i32, %c0_i32_0 : i32, i32
  }
  func.func @transform_4(%arg0: i32) -> (i32, i32) {
    %c0_i32 = arith.constant 0 : i32
    %c0_i32_0 = arith.constant 0 : i32
    %c0_i32_1 = arith.constant 0 : i32
    return %c0_i32, %c0_i32_0 : i32, i32
  }
  func.func @transform_5(%arg0: i32) -> (i32, i32) {
    %c0_i32 = arith.constant 0 : i32
    %c0_i32_0 = arith.constant 0 : i32
    %c0_i32_1 = arith.constant 0 : i32
    return %c0_i32, %c0_i32_0 : i32, i32
  }
  func.func @transform_6(%arg0: i32) -> (i32, i32) {
    %c0_i32 = arith.constant 0 : i32
    %c0_i32_0 = arith.constant 0 : i32
    %c0_i32_1 = arith.constant 0 : i32
    return %c0_i32, %c0_i32_0 : i32, i32
  }
  func.func @transform_7(%arg0: i32) -> (i32, i32) {
    %c0_i32 = arith.constant 0 : i32
    %c0_i32_0 = arith.constant 0 : i32
    return %c0_i32, %arg0 : i32, i32
  }
}

</mosaic_0001>

<llo_original>
// kernel: tpu_custom_call.1
$region0: #{tpu_custom_call.1}
  #allocation0 [shape = 'u32[]', space=smem, size = 0x4, offset = 0x4, fixed_abs, tag = 'smem constant byte address 0x4 - core index']
  #allocation1 [shape = 'u32[72,128]{1,0:T(1,128)}', space=vmem, size = 0x9000, scoped, tag = 'internal scratch']
  %s0 = inlined_call_operand.vmem [shape: f32[9,128], index: 0, kind: input, shape index: {}]
  %s1 = inlined_call_operand.vmem [shape: f32[64,9], index: 1, kind: input, shape index: {}]
  %s2 = inlined_call_operand.vmem [shape: f32[64,1], index: 2, kind: input, shape index: {}]
  %s3 = inlined_call_operand.vmem [shape: f32[64,64], index: 3, kind: input, shape index: {}]
  %s4 = inlined_call_operand.vmem [shape: f32[64,1], index: 4, kind: input, shape index: {}]
  %s5 = inlined_call_operand.vmem [shape: f32[16,64], index: 5, kind: input, shape index: {}]
  %s6 = inlined_call_operand.vmem [shape: f32[16,1], index: 6, kind: input, shape index: {}]
  %s7 = inlined_call_operand.hbm [shape: f32[16,128], index: 7, kind: output, shape index: {}]
  %s8 = sld [smem:[#allocation0]]
  $region38: #{tpu_custom_call.1} parent=0
    _
  %s10 = ssub.s32 1, %s8
  %s11 = scalar_select 0, %s10, %s8
  $region1: #{tpu_custom_call.1} parent=0
    #allocation2 [shape = 'u8[8192]{0}', space=vmem, size = 0x2000, scoped, tag = 'output window, operand 0, single buffered']
    #allocation3 [shape = 's32[1]{0}', space=sflag, size = 0x4, scoped, tag = 'scoped memory for tpu_custom_call.1']
    %12 = vsyncpa [#allocation3], 0
    // Predicated region
    $region2: #{tpu_custom_call.1} parent=1 // pred_check
      _
    $region3: #{tpu_custom_call.1} parent=1 // pred_check_branch
      %14 = sbr.rel (0) target = $region5
    $region4: #{tpu_custom_call.1} parent=1 // pred_region
      _
    $region5: #{tpu_custom_call.1} parent=1 // pred_fallthru
      _
    // Predicated region
    $region6: #{tpu_custom_call.1} parent=1 // pred_check
      _
    $region7: #{tpu_custom_call.1} parent=1 // pred_check_branch
      %16 = sbr.rel (0) target = $region9
    $region8: #{tpu_custom_call.1} parent=1 // pred_region
      _
    $region9: #{tpu_custom_call.1} parent=1 // pred_fallthru
      _
    // Predicated region
    $region10: #{tpu_custom_call.1} parent=1 // pred_check
      _
    $region11: #{tpu_custom_call.1} parent=1 // pred_check_branch
      %18 = sbr.rel (0) target = $region13
    $region12: #{tpu_custom_call.1} parent=1 // pred_region
      _
    $region13: #{tpu_custom_call.1} parent=1 // pred_fallthru
      _
    // Predicated region
    $region14: #{tpu_custom_call.1} parent=1 // pred_check
      _
    $region15: #{tpu_custom_call.1} parent=1 // pred_check_branch
      %20 = sbr.rel (0) target = $region17
    $region16: #{tpu_custom_call.1} parent=1 // pred_region
      _
    $region17: #{tpu_custom_call.1} parent=1 // pred_fallthru
      _
    // Predicated region
    $region18: #{tpu_custom_call.1} parent=1 // pred_check
      _
    $region19: #{tpu_custom_call.1} parent=1 // pred_check_branch
      %22 = sbr.rel (0) target = $region21
    $region20: #{tpu_custom_call.1} parent=1 // pred_region
      _
    $region21: #{tpu_custom_call.1} parent=1 // pred_fallthru
      _
    // Predicated region
    $region22: #{tpu_custom_call.1} parent=1 // pred_check
      _
    $region23: #{tpu_custom_call.1} parent=1 // pred_check_branch
      %24 = sbr.rel (0) target = $region25
    $region24: #{tpu_custom_call.1} parent=1 // pred_region
      _
    $region25: #{tpu_custom_call.1} parent=1 // pred_fallthru
      _
    // Predicated region
    $region26: #{tpu_custom_call.1} parent=1 // pred_check
      _
    $region27: #{tpu_custom_call.1} parent=1 // pred_check_branch
      %26 = sbr.rel (0) target = $region29
    $region28: #{tpu_custom_call.1} parent=1 // pred_region
      _
    $region29: #{tpu_custom_call.1} parent=1 // pred_fallthru
      _
    %v27 = vld [vmem:[%s0] sm:$0xff]
    %v28 = vld [vmem:[%s0 + $0x8] sm:$0x1]
    %v29 = vld [vmem:[%s1] sm:$0xff]
    %v30 = vld [vmem:[%s1 + $0x8] sm:$0xff]
    %v31 = vld [vmem:[%s1 + $0x10] sm:$0xff]
    %v32 = vld [vmem:[%s1 + $0x18] sm:$0xff]
    %v33 = vld [vmem:[%s1 + $0x20] sm:$0xff]
    %v34 = vld [vmem:[%s1 + $0x28] sm:$0xff]
    %v35 = vld [vmem:[%s1 + $0x30] sm:$0xff]
    %v36 = vld [vmem:[%s1 + $0x38] sm:$0xff]
    %v37 = vld [vmem:[%s2] sm:$0xff]
    %v38 = vld [vmem:[%s2 + $0x8] sm:$0xff]
    %v39 = vld [vmem:[%s2 + $0x10] sm:$0xff]
    %v40 = vld [vmem:[%s2 + $0x18] sm:$0xff]
    %v41 = vld [vmem:[%s2 + $0x20] sm:$0xff]
    %v42 = vld [vmem:[%s2 + $0x28] sm:$0xff]
    %v43 = vld [vmem:[%s2 + $0x30] sm:$0xff]
    %v44 = vld [vmem:[%s2 + $0x38] sm:$0xff]
    %46 = vset.pattern.permute.xlu0 0
    %47 = vperm.xlu0 %46, %v37
    %v48 = vpop.permute.xlu0 %47
    %51 = vset.pattern.permute.xlu0 0
    %52 = vperm.xlu0 %51, %v38
    %v53 = vpop.permute.xlu0 %52
    %56 = vset.pattern.permute.xlu0 0
    %57 = vperm.xlu0 %56, %v39
    %v58 = vpop.permute.xlu0 %57
    %61 = vset.pattern.permute.xlu0 0
    %62 = vperm.xlu0 %61, %v40
    %v63 = vpop.permute.xlu0 %62
    %66 = vset.pattern.permute.xlu0 0
    %67 = vperm.xlu0 %66, %v41
    %v68 = vpop.permute.xlu0 %67
    %71 = vset.pattern.permute.xlu0 0
    %72 = vperm.xlu0 %71, %v42
    %v73 = vpop.permute.xlu0 %72
    %76 = vset.pattern.permute.xlu0 0
    %77 = vperm.xlu0 %76, %v43
    %v78 = vpop.permute.xlu0 %77
    %81 = vset.pattern.permute.xlu0 0
    %82 = vperm.xlu0 %81, %v44
    %v83 = vpop.permute.xlu0 %82
    %vm85 = vcmask 72704
    %v87 = vsel %vm85, %v29, 0
    %v90 = vsel %vm85, %v30, 0
    %v93 = vsel %vm85, %v31, 0
    %v96 = vsel %vm85, %v32, 0
    %v99 = vsel %vm85, %v33, 0
    %v102 = vsel %vm85, %v34, 0
    %v105 = vsel %vm85, %v35, 0
    %v108 = vsel %vm85, %v36, 0
    %vm110 = vcmask 1040384
    %v112 = vsel %vm110, %v28, 0
    %114 = vmatpush.msra.mxu0 0.0
    %115 = vmatpush.msra.mxu0 0.0
    %116 = vmatpush.msra.mxu0 0.0
    %117 = vmatpush.msra.mxu0 0.0
    %118 = vmatpush.msra.mxu0 0.0
    %119 = vmatpush.msra.mxu0 0.0
    %120 = vmatpush.msra.mxu0 0.0
    %121 = vmatpush.msra.mxu0 0.0
    %122 = vmatpush.msra.mxu0 0.0
    %123 = vmatpush.msra.mxu0 0.0
    %124 = vmatpush.msra.mxu0 0.0
    %125 = vmatpush.msra.mxu0 0.0
    %126 = vmatpush.msra.mxu0 0.0
    %127 = vmatpush.msra.mxu0 0.0
    %128 = vmatpush.msra.mxu0 %v112
    %129 = vmatpush.msra.mxu0 %v27
    %130 = vmatmul.f32.gmra.mxu0 %v87
    %v131 = vpop.f32.mrf.mxu0
    %v132 = vadd.f32 %v48, %v131
    %133 = vmatmul.f32.gmra.mxu0 %v90
    %v134 = vpop.f32.mrf.mxu0
    %v135 = vadd.f32 %v53, %v134
    %136 = vmatmul.f32.gmra.mxu0 %v93
    %v137 = vpop.f32.mrf.mxu0
    %v138 = vadd.f32 %v58, %v137
    %139 = vmatmul.f32.gmra.mxu0 %v96
    %v140 = vpop.f32.mrf.mxu0
    %v141 = vadd.f32 %v63, %v140
    %142 = vmatmul.f32.gmra.mxu0 %v99
    %v143 = vpop.f32.mrf.mxu0
    %v144 = vadd.f32 %v68, %v143
    %145 = vmatmul.f32.gmra.mxu0 %v102
    %v146 = vpop.f32.mrf.mxu0
    %v147 = vadd.f32 %v73, %v146
    %148 = vmatmul.f32.gmra.mxu0 %v105
    %v149 = vpop.f32.mrf.mxu0
    %v150 = vadd.f32 %v78, %v149
    %151 = vmatmul.f32.gmra.mxu0 %v108
    %v152 = vpop.f32.mrf.mxu0
    %v153 = vadd.f32 %v83, %v152
    %154 = vdwg.mxu0
    %v155 = vmax.f32 %v132, 0.0
    %v156 = vmax.f32 %v135, 0.0
    %v157 = vmax.f32 %v138, 0.0
    %v158 = vmax.f32 %v141, 0.0
    %v159 = vmax.f32 %v144, 0.0
    %v160 = vmax.f32 %v147, 0.0
    %v161 = vmax.f32 %v150, 0.0
    %v162 = vmax.f32 %v153, 0.0
    %v163 = vld [vmem:[%s3] sm:$0xff]
    %v164 = vld [vmem:[%s3 + $0x8] sm:$0xff]
    %v165 = vld [vmem:[%s3 + $0x10] sm:$0xff]
    %v166 = vld [vmem:[%s3 + $0x18] sm:$0xff]
    %v167 = vld [vmem:[%s3 + $0x20] sm:$0xff]
    %v168 = vld [vmem:[%s3 + $0x28] sm:$0xff]
    %v169 = vld [vmem:[%s3 + $0x30] sm:$0xff]
    %v170 = vld [vmem:[%s3 + $0x38] sm:$0xff]
    %v171 = vld [vmem:[%s4] sm:$0xff]
    %v172 = vld [vmem:[%s4 + $0x8] sm:$0xff]
    %v173 = vld [vmem:[%s4 + $0x10] sm:$0xff]
    %v174 = vld [vmem:[%s4 + $0x18] sm:$0xff]
    %v175 = vld [vmem:[%s4 + $0x20] sm:$0xff]
    %v176 = vld [vmem:[%s4 + $0x28] sm:$0xff]
    %v177 = vld [vmem:[%s4 + $0x30] sm:$0xff]
    %v178 = vld [vmem:[%s4 + $0x38] sm:$0xff]
    %180 = vset.pattern.permute.xlu0 0
    %181 = vperm.xlu0 %180, %v171
    %v182 = vpop.permute.xlu0 %181
    %185 = vset.pattern.permute.xlu0 0
    %186 = vperm.xlu0 %185, %v172
    %v187 = vpop.permute.xlu0 %186
    %190 = vset.pattern.permute.xlu0 0
    %191 = vperm.xlu0 %190, %v173
    %v192 = vpop.permute.xlu0 %191
    %195 = vset.pattern.permute.xlu0 0
    %196 = vperm.xlu0 %195, %v174
    %v197 = vpop.permute.xlu0 %196
    %200 = vset.pattern.permute.xlu0 0
    %201 = vperm.xlu0 %200, %v175
    %v202 = vpop.permute.xlu0 %201
    %205 = vset.pattern.permute.xlu0 0
    %206 = vperm.xlu0 %205, %v176
    %v207 = vpop.permute.xlu0 %206
    %210 = vset.pattern.permute.xlu0 0
    %211 = vperm.xlu0 %210, %v177
    %v212 = vpop.permute.xlu0 %211
    %215 = vset.pattern.permute.xlu0 0
    %216 = vperm.xlu0 %215, %v178
    %v217 = vpop.permute.xlu0 %216
    %vm219 = vcmask 523264
    %v221 = vsel %vm219, %v163, 0
    %v224 = vsel %vm219, %v164, 0
    %v227 = vsel %vm219, %v165, 0
    %v230 = vsel %vm219, %v166, 0
    %v233 = vsel %vm219, %v167, 0
    %v236 = vsel %vm219, %v168, 0
    %v239 = vsel %vm219, %v169, 0
    %v242 = vsel %vm219, %v170, 0
    %244 = vmatpush.msra.mxu0 0.0
    %245 = vmatpush.msra.mxu0 0.0
    %246 = vmatpush.msra.mxu0 0.0
    %247 = vmatpush.msra.mxu0 0.0
    %248 = vmatpush.msra.mxu0 0.0
    %249 = vmatpush.msra.mxu0 0.0
    %250 = vmatpush.msra.mxu0 0.0
    %251 = vmatpush.msra.mxu0 0.0
    %252 = vmatpush.msra.mxu0 %v162
    %253 = vmatpush.msra.mxu0 %v161
    %254 = vmatpush.msra.mxu0 %v160
    %255 = vmatpush.msra.mxu0 %v159
    %256 = vmatpush.msra.mxu0 %v158
    %257 = vmatpush.msra.mxu0 %v157
    %258 = vmatpush.msra.mxu0 %v156
    %259 = vmatpush.msra.mxu0 %v155
    %260 = vmatmul.f32.gmra.mxu0 %v221
    %v261 = vpop.f32.mrf.mxu0
    %v262 = vadd.f32 %v182, %v261
    %263 = vmatmul.f32.gmra.mxu0 %v224
    %v264 = vpop.f32.mrf.mxu0
    %v265 = vadd.f32 %v187, %v264
    %266 = vmatmul.f32.gmra.mxu0 %v227
    %v267 = vpop.f32.mrf.mxu0
    %v268 = vadd.f32 %v192, %v267
    %269 = vmatmul.f32.gmra.mxu0 %v230
    %v270 = vpop.f32.mrf.mxu0
    %v271 = vadd.f32 %v197, %v270
    %272 = vmatmul.f32.gmra.mxu0 %v233
    %v273 = vpop.f32.mrf.mxu0
    %v274 = vadd.f32 %v202, %v273
    %275 = vmatmul.f32.gmra.mxu0 %v236
    %v276 = vpop.f32.mrf.mxu0
    %v277 = vadd.f32 %v207, %v276
    %278 = vmatmul.f32.gmra.mxu0 %v239
    %v279 = vpop.f32.mrf.mxu0
    %v280 = vadd.f32 %v212, %v279
    %281 = vmatmul.f32.gmra.mxu0 %v242
    %v282 = vpop.f32.mrf.mxu0
    %v283 = vadd.f32 %v217, %v282
    %284 = vdwg.mxu0
    %v285 = vmax.f32 %v262, 0.0
    %v286 = vmax.f32 %v265, 0.0
    %v287 = vmax.f32 %v268, 0.0
    %v288 = vmax.f32 %v271, 0.0
    %v289 = vmax.f32 %v274, 0.0
    %v290 = vmax.f32 %v277, 0.0
    %v291 = vmax.f32 %v280, 0.0
    %v292 = vmax.f32 %v283, 0.0
    %v293 = vld [vmem:[%s5] sm:$0xff]
    %v294 = vld [vmem:[%s5 + $0x8] sm:$0xff]
    %v295 = vld [vmem:[%s6] sm:$0xff]
    %v296 = vld [vmem:[%s6 + $0x8] sm:$0xff]
    %298 = vset.pattern.permute.xlu0 0
    %299 = vperm.xlu0 %298, %v295
    %v300 = vpop.permute.xlu0 %299
    %303 = vset.pattern.permute.xlu0 0
    %304 = vperm.xlu0 %303, %v296
    %v305 = vpop.permute.xlu0 %304
    %v308 = vsel %vm219, %v293, 0
    %v311 = vsel %vm219, %v294, 0
    %313 = vmatpush.msra.mxu0 0.0
    %314 = vmatpush.msra.mxu0 0.0
    %315 = vmatpush.msra.mxu0 0.0
    %316 = vmatpush.msra.mxu0 0.0
    %317 = vmatpush.msra.mxu0 0.0
    %318 = vmatpush.msra.mxu0 0.0
    %319 = vmatpush.msra.mxu0 0.0
    %320 = vmatpush.msra.mxu0 0.0
    %321 = vmatpush.msra.mxu0 %v292
    %322 = vmatpush.msra.mxu0 %v291
    %323 = vmatpush.msra.mxu0 %v290
    %324 = vmatpush.msra.mxu0 %v289
    %325 = vmatpush.msra.mxu0 %v288
    %326 = vmatpush.msra.mxu0 %v287
    %327 = vmatpush.msra.mxu0 %v286
    %328 = vmatpush.msra.mxu0 %v285
    %329 = vmatmul.f32.gmra.mxu0 %v308
    %v330 = vpop.f32.mrf.mxu0
    %v331 = vadd.f32 %v300, %v330
    %332 = vmatmul.f32.gmra.mxu0 %v311
    %v333 = vpop.f32.mrf.mxu0
    %v334 = vadd.f32 %v305, %v333
    %335 = vdwg.mxu0
    %v336 = vlaneseq
    %v337 = vshrl.u32 %v336, 7
    %v338 = vadd.s32 %v337, 8
    %vm339 = vcmp.lt.s32.totalorder %v337, 9
    %vm340 = vcmp.lt.s32.totalorder %v338, 9
    %v341 = vsel %vm339, %v331, -inf
    %v342 = vsel %vm340, %v334, -inf
    %v343 = vmax.f32 %v341, %v342
    %v344 = vrot.slane %v343, 4
    %v345 = vmax.f32 %v343, %v344
    %v346 = vrot.slane %v345, 2
    %v347 = vmax.f32 %v345, %v346
    %v348 = vrot.slane %v347, 1
    %v349 = vmax.f32 %v347, %v348
    %v350 = vsub.f32 %v331, %v349
    %v351 = vsub.f32 %v334, %v349
    %v352 = vmul.f32 %v350, 1.442695
    %v353 = vpow.pop %v352
    %v354 = vmul.f32 %v351, 1.442695
    %v355 = vpow.pop %v354
    %v356 = vsel %vm339, %v353, 0.0
    %v357 = vsel %vm340, %v355, 0.0
    %v358 = vadd.f32 %v356, %v357
    %v359 = vrot.slane %v358, 4
    %v360 = vadd.f32 %v358, %v359
    %v361 = vrot.slane %v360, 2
    %v362 = vadd.f32 %v360, %v361
    %v363 = vrot.slane %v362, 1
    %v364 = vadd.f32 %v362, %v363
    %v365 = vlog2.pop %v364
    %v366 = vmul.f32 %v365, 0.6931472
    %v367 = vsub.f32 %v350, %v366
    %v368 = vsub.f32 %v351, %v366
    %v369 = vtanh.pop %v331
    %v370 = vtanh.pop %v334
    %vm371 = vcmp.eq.s32.totalorder %v337, 9
    %vm372 = vcmp.eq.s32.totalorder %v338, 9
    %v373 = vsel %vm371, %v369, 0.0
    %v374 = vsel %vm372, %v370, 0.0
    %v375 = vsel %vm339, %v367, %v373
    %v376 = vsel %vm340, %v368, %v374
    %377 = vst [vmem:[#allocation2] sm:$0xff] %v375
    %378 = vst [vmem:[#allocation2 + $0x8] sm:$0xff] %v376
    // Predicated region
    $region30: #{tpu_custom_call.1} parent=1 // pred_check
      _
    $region31: #{tpu_custom_call.1} parent=1 // pred_check_branch
      %380 = sbr.rel (0) target = $region33
    $region32: #{tpu_custom_call.1} parent=1 // pred_region
      %382 = vsyncadd [#allocation3], 0
      %s383 = sshll.u32 [#allocation2], 4
      %s384 = int_to_ptr.vmem [resolvable:$true] %s383
      %s385 = sshll.u32 %s7, 4
      %s386 = int_to_ptr.hbm [resolvable:$true] %s385
      %391 = dma.vmem_to_hbm [thread:$0]  %s384, 256, %s386, [#allocation3], 128, 128, 8
    $region33: #{tpu_custom_call.1} parent=1 // pred_fallthru
      _
    // Predicated region
    $region34: #{tpu_custom_call.1} parent=1 // pred_check
      _
    $region35: #{tpu_custom_call.1} parent=1 // pred_check_branch
      %393 = sbr.rel (0) target = $region37
    $region36: #{tpu_custom_call.1} parent=1 // pred_region
      %395 = dma.done [#allocation3], 256
    $region37: #{tpu_custom_call.1} parent=1 // pred_fallthru
      _
    %396 = vsyncpa [#allocation3], 1

</llo_original>
